<compile_context>
chip_gen: v5e
topology: v5e:2x2
jax: 0.10.0
libtpu: 0.0.40
codegen_flags: <defaults>
</compile_context>

<pallas_src>
import functools
import math

import jax
import jax.numpy as jnp
from jax.experimental import pallas as pl
from jax.experimental.pallas import tpu as pltpu

_MAX_LEN = 5000
_SUBLANE = 8
_LANE = 128
_DEFAULT_BLOCK_BYTES = 4 << 20   # ~4 MiB x-blocks: flat part of the HBM roofline curve;
                                 # double-buffered (in+out) footprint ~17 MiB, safe on v5e/v6e/v7x
_MIN_SPLIT_BYTES = 4 << 20       # force >=2 grid blocks above this total size (v7x: 2 TCs/chip)
_VMEM_CAP_BYTES = 48 << 20       # never request more scoped VMEM than this (v7x: 64 MiB physical)


@functools.lru_cache(maxsize=64)
def _pe_table(seq_len: int, num_features: int) -> jax.Array:
    """f32 (seq_len, num_features) buffer, identical to the PyTorch construction.

    lru_cache mirrors register_buffer: sin/cos run once per shape, not per call.
    """
    position = jnp.arange(seq_len, dtype=jnp.float32)[:, None]
    div_term = jnp.exp(
        jnp.arange(0, num_features, 2, dtype=jnp.float32)
        * (-math.log(10000.0) / num_features)
    )
    angles = position * div_term                              # (S, ceil(F/2))
    pe = jnp.zeros((seq_len, num_features), jnp.float32)
    pe = pe.at[:, 0::2].set(jnp.sin(angles))
    # slice keeps odd F well-defined (PyTorch itself would error for odd F)
    pe = pe.at[:, 1::2].set(jnp.cos(angles[:, : num_features // 2]))
    return pe


def _pe_add_kernel(x_ref, pe_ref, o_ref):
    # x_ref: (t_rows, t_cols); pe_ref: (pe_rows, t_cols) with pe_rows in {1, t_rows}.
    # Native-dtype add (PE is pre-cast in the wrapper); broadcasts over rows when
    # pe_rows == 1.  Pure VPU add -> the kernel is bound by the HBM stream.
    o_ref[...] = (x_ref[...] + pe_ref[...]).astype(o_ref.dtype)


def _aligned_divisors(n: int, align: int):
    """Divisors of n that are multiples of `align`, ascending. Empty if n % align != 0."""
    if align <= 0 or n % align != 0:
        return []
    m = n // align
    return [d * align for d in range(1, m + 1) if m % d == 0]


def _choose_fold(batch: int, seq: int, feat: int) -> int:
    """Pick S1 (sequence fold into the row axis) so batch*S1 fills all 8 sublanes.

    Returns S1 with seq % S1 == 0.  S1 == 1 means no folding (batch already a
    multiple of 8, or no usable factorization of seq exists).
    """
    if batch % _SUBLANE == 0:
        return 1
    best_rows_only = 1
    for s1 in range(1, seq + 1):
        if seq % s1 != 0:
            continue
        rows_ok = (batch * s1) % _SUBLANE == 0
        cols_ok = ((seq // s1) * feat) % _LANE == 0
        if rows_ok and cols_ok:
            return s1                       # sublane-full AND lane-dense
        if rows_ok and best_rows_only == 1:
            best_rows_only = s1             # at least sublane-full
    return best_rows_only


def _choose_tiles(rows: int, cols: int, itemsize: int, s1: int, target_block_bytes: int):
    """Jointly pick (t_rows, t_cols) near the byte target, honoring (8,128) rules.

    t_rows is a multiple of lcm(8, s1) dividing rows (or the full extent);
    t_cols is a multiple of 128 dividing cols (or the full extent).  For inputs
    above _MIN_SPLIT_BYTES the grid is forced to have >= 2 blocks so both v7x
    TensorCores get work.
    """
    row_align = (_SUBLANE * s1) // math.gcd(_SUBLANE, s1)
    row_cands = _aligned_divisors(rows, row_align)
    if not row_cands or row_cands[-1] != rows:
        row_cands = row_cands + [rows]                 # full extent is always legal
    col_cands = _aligned_divisors(cols, _LANE)
    if not col_cands or col_cands[-1] != cols:
        col_cands = col_cands + [cols]

    def pick(min_grid):
        best = None
        for tc in col_cands:
            for tr in row_cands:
                grid = (cols // tc) * (rows // tr)
                if grid < min_grid:
                    continue
                blk = tr * tc * itemsize
                fits = blk <= target_block_bytes
                # Prefer blocks under the target; among those the largest; if
                # nothing fits, the smallest oversize block.  Tie-break on lane
                # width (wider column tiles), then row height.
                key = (fits, blk if fits else -blk, tc, tr)
                if best is None or key > best[0]:
                    best = (key, tr, tc)
        return None if best is None else (best[1], best[2])

    total = rows * cols * itemsize
    min_grid = 2 if total >= _MIN_SPLIT_BYTES else 1
    choice = pick(min_grid)
    if choice is None:                                  # cannot split at all
        choice = pick(1)
    return choice


def positional_encoding_add(
    x: jax.Array,
    *,
    max_len: int = _MAX_LEN,
    target_block_bytes: int = _DEFAULT_BLOCK_BYTES,
) -> jax.Array:
    """x: (B, S, F) -> x + PE[:S, :]   (same shape / dtype as the PyTorch module)."""
    b, s, f = x.shape
    if s > max_len:
        raise ValueError(f"window_size {s} exceeds max_len {max_len}")

    itemsize = jnp.dtype(x.dtype).itemsize

    # Fold part of the sequence axis into the row axis for small/ragged batches.
    s1 = _choose_fold(b, s, f)
    s2 = s // s1
    rows, cols = b * s1, s2 * f

    t_rows, t_cols = _choose_tiles(rows, cols, itemsize, s1, target_block_bytes)

    x2d = x.reshape(rows, cols)                       # lane-dense view (see layout NOTE above)

    # PE "buffer": native dtype so the in-kernel add needs no f32 up/down-cast
    # (bf16 VALU on v6e/v7x; small precision deviation vs PyTorch's f32 buffer).
    pe = _pe_table(s, f).astype(x.dtype).reshape(s1, cols)
    if s1 == 1:
        pe_rows = 1                                    # one row, broadcast over the batch in-kernel
    else:
        pe_rows = t_rows                               # t_rows % s1 == 0 by construction
        pe = jnp.tile(pe, (t_rows // s1, 1))           # row r of the tile = PE row (r % s1)

    grid = (cols // t_cols, rows // t_rows)            # columns outer, rows inner
    # -> PE block index depends only on the column axis, so the same PE tile
    #    stays resident in VMEM across the whole inner (row/batch) axis.

    # Scoped-VMEM budget: double-buffered x + out blocks, plus the resident PE tile.
    blk_bytes = t_rows * t_cols * itemsize
    pe_bytes = pe_rows * t_cols * itemsize
    footprint = 2 * (2 * blk_bytes) + 2 * pe_bytes + (1 << 20)
    vmem_limit = int(min(max(footprint, 16 << 20), _VMEM_CAP_BYTES))

    out2d = pl.pallas_call(
        _pe_add_kernel,
        out_shape=jax.ShapeDtypeStruct((rows, cols), x.dtype),
        grid_spec=pltpu.PrefetchScalarGridSpec(
            num_scalar_prefetch=0,
            grid=grid,
            in_specs=[
                pl.BlockSpec((t_rows, t_cols), lambda ci, ri: (ri, ci)),
                pl.BlockSpec((pe_rows, t_cols), lambda ci, ri: (0, ci)),
            ],
            out_specs=pl.BlockSpec((t_rows, t_cols), lambda ci, ri: (ri, ci)),
        ),
        compiler_params=pltpu.CompilerParams(
            dimension_semantics=("parallel", "parallel"),
            vmem_limit_bytes=vmem_limit,
        ),
        # Pure in-place add: alias x to the output (free footprint/latency win
        # when x is donated at the jit boundary; XLA copies defensively otherwise).
        input_output_aliases={0: 0},
    )(x2d, pe)

    return out2d.reshape(b, s, f)


if __name__ == "__main__":
    # Shapes consistent with forward(): (batch, window_size, num_input_features)
    B, S, F = 2, 8, 32
    key = jax.random.PRNGKey(0)
    x = jax.random.normal(key, (B, S, F), dtype=jnp.float32)

    out = jax.block_until_ready(positional_encoding_add(x))
    ref = x + _pe_table(S, F)[None, :, :]
    assert out.shape == x.shape and out.dtype == x.dtype
    assert jnp.allclose(out, ref, atol=1e-5, rtol=1e-5)

    # Small batch (B=4) where the sequence fold gives both a full sublane axis
    # (rows = B*S1 = 8) and a lane-dense column axis ((S/S1)*F multiple of 128).
    B2, S2, F2 = 4, 64, 64
    x2 = jax.random.normal(jax.random.PRNGKey(1), (B2, S2, F2), dtype=jnp.float32)
    out2 = jax.block_until_ready(positional_encoding_add(x2))
    ref2 = x2 + _pe_table(S2, F2)[None, :, :]
    assert jnp.allclose(out2, ref2, atol=1e-5, rtol=1e-5)

    # Larger shape with a small block target to exercise a real multi-tile grid
    # (joint row/column tiling + PE reuse across the inner row axis).
    B3, S3, F3 = 16, 128, 32
    x3 = jax.random.normal(jax.random.PRNGKey(2), (B3, S3, F3), dtype=jnp.float32)
    out3 = jax.block_until_ready(
        positional_encoding_add(x3, target_block_bytes=64 << 10)
    )
    ref3 = x3 + _pe_table(S3, F3)[None, :, :]
    assert jnp.allclose(out3, ref3, atol=1e-5, rtol=1e-5)

    # bf16 input: PE is pre-cast and the add runs natively in bf16.
    x4 = x.astype(jnp.bfloat16)
    out4 = jax.block_until_ready(positional_encoding_add(x4))
    ref4 = (x4.astype(jnp.float32) + _pe_table(S, F)[None, :, :]).astype(jnp.bfloat16)
    assert out4.dtype == jnp.bfloat16
    assert jnp.allclose(
        out4.astype(jnp.float32), ref4.astype(jnp.float32), atol=2e-2, rtol=2e-2
    )

    print("KERNEL_OK")
</pallas_src>

<mosaic_0001>
module attributes {stable_mosaic.version = 11 : i64} {
  func.func @_pe_add_kernel(%arg0: i32, %arg1: i32, %arg2: memref<8x64xf32, #tpu.memory_space<vmem>>, %arg3: memref<8x64xf32, #tpu.memory_space<vmem>>, %arg4: memref<8x64xf32, #tpu.memory_space<vmem>>) attributes {dimension_semantics = [#tpu.dimension_semantics<parallel>, #tpu.dimension_semantics<parallel>], iteration_bounds = array<i64: 1, 1>, scalar_prefetch = 0 : i64, scratch_operands = 0 : i64, tpu.core_type = #tpu.core_type<tc>, window_params = [{transform_indices = @transform_0, window_bounds = array<i64: 8, 64>}, {transform_indices = @transform_1, window_bounds = array<i64: 8, 64>}, {transform_indices = @transform_2, window_bounds = array<i64: 8, 64>}]} {
    %c0 = arith.constant 0 : index
    %c0_0 = arith.constant 0 : index
    %0 = vector.load %arg2[%c0, %c0_0] : memref<8x64xf32, #tpu.memory_space<vmem>>, vector<8x64xf32>
    %c0_1 = arith.constant 0 : index
    %c0_2 = arith.constant 0 : index
    %1 = vector.load %arg3[%c0_1, %c0_2] : memref<8x64xf32, #tpu.memory_space<vmem>>, vector<8x64xf32>
    %2 = arith.addf %0, %1 : vector<8x64xf32>
    %c0_3 = arith.constant 0 : index
    %c0_4 = arith.constant 0 : index
    %3 = vector.load %arg4[%c0_3, %c0_4] : memref<8x64xf32, #tpu.memory_space<vmem>>, vector<8x64xf32>
    tpu.vector_store %arg4[%c0_3, %c0_4], %2 {strides = array<i32>} : memref<8x64xf32, #tpu.memory_space<vmem>>, vector<8x64xf32>,
    return
  }
  func.func @transform_0(%arg0: i32, %arg1: i32) -> (i32, i32) {
    %c0_i32 = arith.constant 0 : i32
    return %arg1, %arg0 : i32, i32
  }
  func.func @transform_1(%arg0: i32, %arg1: i32) -> (i32, i32) {
    %c0_i32 = arith.constant 0 : i32
    %c0_i32_0 = arith.constant 0 : i32
    return %c0_i32, %arg0 : i32, i32
  }
  func.func @transform_2(%arg0: i32, %arg1: i32) -> (i32, i32) {
    %c0_i32 = arith.constant 0 : i32
    return %arg1, %arg0 : i32, i32
  }
}

</mosaic_0001>

<llo_original>
// kernel: tpu_custom_call.1
$region0: #{tpu_custom_call.1}
  #allocation0 [shape = 'u32[]', space=smem, size = 0x4, offset = 0x4, fixed_abs, tag = 'smem constant byte address 0x4 - core index']
  #allocation1 [shape = 'u32[72,128]{1,0:T(1,128)}', space=vmem, size = 0x9000, scoped, tag = 'internal scratch']
  %s0 = inlined_call_operand.hbm [shape: f32[8,64], index: 0, kind: input, shape index: {}, may-alias: {0,2}]
  %s1 = inlined_call_operand.vmem [shape: f32[8,64], index: 1, kind: input, shape index: {}]
  %s2 = inlined_call_operand.hbm [shape: f32[8,64], index: 2, kind: output, shape index: {}, may-alias: {0,2}]
  %s3 = sld [smem:[#allocation0]]
  $region22: #{tpu_custom_call.1} parent=0
    _
  %s5 = ssub.s32 1, %s3
  %s6 = scalar_select 0, %s5, %s3
  $region1: #{tpu_custom_call.1} parent=0
    #allocation2 [shape = 'u8[4096]{0}', space=vmem, size = 0x1000, scoped, tag = 'input window, operand 0, single buffered']
    #allocation3 [shape = 's32[1]{0}', space=sflag, size = 0x4, scoped, tag = 'scoped memory for tpu_custom_call.1']
    #allocation4 [shape = 's32[1]{0}', space=sflag, size = 0x4, scoped, tag = 'scoped memory for tpu_custom_call.1']
    #allocation5 [shape = 'u8[4096]{0}', space=vmem, size = 0x1000, scoped, tag = 'output window, operand 0, single buffered']
    %7 = vsyncpa [#allocation3], 0
    %8 = vsyncpa [#allocation4], 0
    // Predicated region
    $region2: #{tpu_custom_call.1} parent=1 // pred_check
      _
    $region3: #{tpu_custom_call.1} parent=1 // pred_check_branch
      %10 = sbr.rel (0) target = $region5
    $region4: #{tpu_custom_call.1} parent=1 // pred_region
      %12 = vsyncadd [#allocation3], 0
      %s14 = sshll.u32 %s0, 4
      %s15 = int_to_ptr.hbm [resolvable:$true] %s14
      %s16 = sshll.u32 [#allocation2], 4
      %s17 = int_to_ptr.vmem [resolvable:$true] %s16
      %19 = dma.hbm_to_vmem [thread:$0]  %s15, 128, %s17, [#allocation3]
    $region5: #{tpu_custom_call.1} parent=1 // pred_fallthru
      _
    // Predicated region
    $region6: #{tpu_custom_call.1} parent=1 // pred_check
      _
    $region7: #{tpu_custom_call.1} parent=1 // pred_check_branch
      %21 = sbr.rel (0) target = $region9
    $region8: #{tpu_custom_call.1} parent=1 // pred_region
      _
    $region9: #{tpu_custom_call.1} parent=1 // pred_fallthru
      _
    // Predicated region
    $region10: #{tpu_custom_call.1} parent=1 // pred_check
      _
    $region11: #{tpu_custom_call.1} parent=1 // pred_check_branch
      %23 = sbr.rel (0) target = $region13
    $region12: #{tpu_custom_call.1} parent=1 // pred_region
      %25 = dma.done [#allocation3], 128
    $region13: #{tpu_custom_call.1} parent=1 // pred_fallthru
      _
    %v26 = vld [vmem:[#allocation2] sm:$0xff]
    %v27 = vld [vmem:[%s1] sm:$0xff]
    %v28 = vadd.f32 %v26, %v27
    %vm29 = vcmask 523264
    %30 = vst.msk [vmem:[#allocation5] sm:$0xff] %vm29, %v28
    // Predicated region
    $region14: #{tpu_custom_call.1} parent=1 // pred_check
      _
    $region15: #{tpu_custom_call.1} parent=1 // pred_check_branch
      %32 = sbr.rel (0) target = $region17
    $region16: #{tpu_custom_call.1} parent=1 // pred_region
      %34 = vsyncadd [#allocation4], 0
      %s36 = sshll.u32 [#allocation5], 4
      %s37 = int_to_ptr.vmem [resolvable:$true] %s36
      %s38 = sshll.u32 %s2, 4
      %s39 = int_to_ptr.hbm [resolvable:$true] %s38
      %41 = dma.vmem_to_hbm [thread:$0]  %s37, 128, %s39, [#allocation4]
    $region17: #{tpu_custom_call.1} parent=1 // pred_fallthru
      _
    // Predicated region
    $region18: #{tpu_custom_call.1} parent=1 // pred_check
      _
    $region19: #{tpu_custom_call.1} parent=1 // pred_check_branch
      %43 = sbr.rel (0) target = $region21
    $region20: #{tpu_custom_call.1} parent=1 // pred_region
      %45 = dma.done [#allocation4], 128
    $region21: #{tpu_custom_call.1} parent=1 // pred_fallthru
      _
    %46 = vsyncpa [#allocation3], 1
    %47 = vsyncpa [#allocation4], 1

</llo_original>
